<compile_context>
chip_gen: v6e
topology: v6e:2x2x1
jax: 0.10.0
libtpu: 0.0.40
codegen_flags: <defaults>
</compile_context>

<pallas_src>
import functools

import jax
import jax.numpy as jnp
from jax.experimental import pallas as pl
from jax.experimental.pallas import tpu as pltpu


def _gating_kernel(x_ref, w1_ref, b1_ref, w2_ref, b2_ref, nrm_ref, o_ref, *,
                   mxu_dtype, fast_math):
    # x_ref:   (TM, H*D)     packed query rows (one row = all heads of a token)
    # w1_ref:  (H*D, H*Hg)   block-diagonal first linear weight  (mxu_dtype)
    # b1_ref:  (1, H*Hg)     tiled first linear bias             (f32)
    # w2_ref:  (H*Hg, H*3)   block-diagonal second linear weight (mxu_dtype)
    # b2_ref:  (1, H*3)      tiled second linear bias            (f32)
    # nrm_ref: (H*3, H*3)    kron(I_H, ones(3,3)) gate-sum broadcast (mxu_dtype)
    # o_ref:   (TM, H*3)     normalized gate scores
    x = x_ref[...]  # already in mxu_dtype (bf16 by default); f32 accumulation below

    # Linear 1 + GELU (tanh form -> EUP in fast-math mode).
    h = jnp.dot(x, w1_ref[...], preferred_element_type=jnp.float32) + b1_ref[...]
    h = jax.nn.gelu(h, approximate=fast_math)
    h = h.astype(mxu_dtype)  # bf16 LHS for the second matmul (and smaller spills)

    # Linear 2 + sigmoid.
    g = jnp.dot(h, w2_ref[...], preferred_element_type=jnp.float32) + b2_ref[...]
    g = jax.nn.sigmoid(g)

    # Per-head normalization: tiny bf16 matmul broadcasts each head's 3-gate sum.
    denom = jnp.dot(g.astype(mxu_dtype), nrm_ref[...],
                    preferred_element_type=jnp.float32) + 1e-6
    if fast_math:
        out = g * pl.reciprocal(denom, approx=True)   # divide on the EUP slot
    else:
        out = g / denom
    o_ref[...] = out.astype(o_ref.dtype)


def prepare_gating_params(w1, b1, w2, b2, num_heads, mxu_dtype=jnp.bfloat16):
    """Expand per-head Linear weights into the packed block-diagonal form.

    Call once at module init (hoists the kron / tile expansion out of the
    per-call path).  Biases stay f32 (added to the f32 accumulator).
    """
    h = int(num_heads)
    eye_h = jnp.eye(h, dtype=jnp.float32)
    w1_bd = jnp.kron(eye_h, w1.astype(jnp.float32)).astype(mxu_dtype)      # (H*D, H*Hg)
    b1_bd = jnp.tile(b1.astype(jnp.float32), h).reshape(1, -1)             # (1, H*Hg)
    w2_bd = jnp.kron(eye_h, w2.astype(jnp.float32)).astype(mxu_dtype)      # (H*Hg, H*3)
    b2_bd = jnp.tile(b2.astype(jnp.float32), h).reshape(1, -1)             # (1, H*3)
    nrm = jnp.kron(eye_h, jnp.ones((3, 3), jnp.float32)).astype(mxu_dtype)  # (H*3, H*3)
    return w1_bd, b1_bd, w2_bd, b2_bd, nrm


def _pick_row_tile(rows, tm):
    """Row tile: multiple of 16 (bf16 sublane packing), capped at 8192, and
    clamped so the grid keeps >= 4 steps when rows permit (>= 2 per TC on v7x)."""
    tm = max(16, (min(int(tm), 8192) // 16) * 16)
    quarter = max(16, (((rows + 3) // 4) + 15) // 16 * 16)  # ~ceil(rows/4), x16
    return min(tm, quarter)


@functools.partial(jax.jit, static_argnames=("tm", "fast_math"))
def gating_network_packed(q, w1_bd, b1_bd, w2_bd, b2_bd, nrm, *, tm=4096,
                          fast_math=True):
    """q: [B, S, H, D] + packed params -> gates [B, S, H, 3] (PyTorch forward)."""
    B, S, H, D = q.shape
    rows = B * S
    lane_in = H * D
    lane_out = H * 3
    hid = w1_bd.shape[1]  # H * gate_hidden

    # Pack heads into lanes (free row-major reshape) and hand the MXU its
    # compute dtype (no-op when q is already bf16, which is the common case).
    x = q.reshape(rows, lane_in).astype(w1_bd.dtype)

    tm_eff = _pick_row_tile(rows, tm)
    grid = (pl.cdiv(rows, tm_eff),)  # Pallas masks the ragged edge block

    kernel = functools.partial(_gating_kernel, mxu_dtype=w2_bd.dtype,
                               fast_math=fast_math)

    out = pl.pallas_call(
        kernel,
        out_shape=jax.ShapeDtypeStruct((rows, lane_out), q.dtype),
        grid_spec=pltpu.PrefetchScalarGridSpec(
            num_scalar_prefetch=0,
            grid=grid,
            in_specs=[
                pl.BlockSpec((tm_eff, lane_in), lambda i: (i, 0)),     # x tile
                pl.BlockSpec((lane_in, hid), lambda i: (0, 0)),        # W1 block-diag
                pl.BlockSpec((1, hid), lambda i: (0, 0)),              # b1
                pl.BlockSpec((hid, lane_out), lambda i: (0, 0)),       # W2 block-diag
                pl.BlockSpec((1, lane_out), lambda i: (0, 0)),         # b2
                pl.BlockSpec((lane_out, lane_out), lambda i: (0, 0)),  # gate-sum mask
            ],
            out_specs=pl.BlockSpec((tm_eff, lane_out), lambda i: (i, 0)),
        ),
        compiler_params=pltpu.CompilerParams(
            dimension_semantics=("parallel",)),
    )(x, w1_bd, b1_bd, w2_bd, b2_bd, nrm)

    # (B*S, H*3) is a free row-major reshape of [B, S, H, 3].
    return out.reshape(B, S, H, 3)


def gating_network(q, w1, b1, w2, b2, *, tm=4096, fast_math=True,
                   mxu_dtype=jnp.bfloat16):
    """One-shot convenience wrapper (prefer hoisting prepare_gating_params)."""
    params = prepare_gating_params(w1, b1, w2, b2, q.shape[2], mxu_dtype=mxu_dtype)
    return gating_network_packed(q, *params, tm=tm, fast_math=fast_math)


def _reference(q, w1, b1, w2, b2):
    """Pure-JAX f32 reference (mirrors the PyTorch forward exactly)."""
    B, S, H, D = q.shape
    x = q.reshape(-1, D).astype(jnp.float32)
    h = jax.nn.gelu(x @ w1.astype(jnp.float32) + b1.astype(jnp.float32),
                    approximate=False)
    g = jax.nn.sigmoid(h @ w2.astype(jnp.float32) + b2.astype(jnp.float32))
    g = g / (jnp.sum(g, axis=-1, keepdims=True) + 1e-6)
    return g.reshape(B, S, H, 3)


if __name__ == "__main__":
    # Small config consistent with the module:
    #   head_dim=32, num_heads=4, nsa_gate_hidden_size=16; 2x64 tokens so the
    #   kernel exercises a multi-step "parallel" grid.
    B, S, H, D, GATE_HIDDEN = 2, 64, 4, 32, 16

    key = jax.random.PRNGKey(0)
    kq, k1, k2, k3, k4 = jax.random.split(key, 5)

    q = jax.random.normal(kq, (B, S, H, D), dtype=jnp.float32)

    # Deterministic synthetic parameters (shapes from the nn.Linear layers).
    w1 = jax.random.normal(k1, (D, GATE_HIDDEN), dtype=jnp.float32) * 0.1
    b1 = jax.random.normal(k2, (GATE_HIDDEN,), dtype=jnp.float32) * 0.1
    w2 = jax.random.normal(k3, (GATE_HIDDEN, 3), dtype=jnp.float32) * 0.1
    b2 = jax.random.normal(k4, (3,), dtype=jnp.float32) * 0.1

    # Hoisted weight packing (done once, outside the per-call jitted path).
    params = prepare_gating_params(w1, b1, w2, b2, H, mxu_dtype=jnp.bfloat16)

    gates = gating_network_packed(q, *params)
    gates = jax.block_until_ready(gates)

    ref = _reference(q, w1, b1, w2, b2)
    assert gates.shape == (B, S, H, 3)
    # bf16 MXU operands + tanh GELU + approx reciprocal => relaxed tolerance.
    max_err = float(jnp.max(jnp.abs(gates.astype(jnp.float32) - ref)))
    assert max_err < 2e-2, max_err

    print("KERNEL_OK")
</pallas_src>

<mosaic_0001>
module attributes {stable_mosaic.version = 11 : i64} {
  func.func @_gating_kernel(%arg0: i32, %arg1: memref<32x128xbf16, #tpu.memory_space<vmem>>, %arg2: memref<128x64xbf16, #tpu.memory_space<vmem>>, %arg3: memref<1x64xf32, #tpu.memory_space<vmem>>, %arg4: memref<64x12xbf16, #tpu.memory_space<vmem>>, %arg5: memref<1x12xf32, #tpu.memory_space<vmem>>, %arg6: memref<12x12xbf16, #tpu.memory_space<vmem>>, %arg7: memref<32x12xf32, #tpu.memory_space<vmem>>) attributes {dimension_semantics = [#tpu.dimension_semantics<parallel>], iteration_bounds = array<i64: 4>, scalar_prefetch = 0 : i64, scratch_operands = 0 : i64, tpu.core_type = #tpu.core_type<tc>, window_params = [{transform_indices = @transform_0, window_bounds = array<i64: 32, 128>}, {pipeline_mode = #tpu.pipeline_mode<synchronous>, transform_indices = @transform_1, window_bounds = array<i64: 128, 64>}, {pipeline_mode = #tpu.pipeline_mode<synchronous>, transform_indices = @transform_2, window_bounds = array<i64: 1, 64>}, {pipeline_mode = #tpu.pipeline_mode<synchronous>, transform_indices = @transform_3, window_bounds = array<i64: 64, 12>}, {pipeline_mode = #tpu.pipeline_mode<synchronous>, transform_indices = @transform_4, window_bounds = array<i64: 1, 12>}, {pipeline_mode = #tpu.pipeline_mode<synchronous>, transform_indices = @transform_5, window_bounds = array<i64: 12, 12>}, {transform_indices = @transform_6, window_bounds = array<i64: 32, 12>}]} {
    %c0 = arith.constant 0 : index
    %c0_0 = arith.constant 0 : index
    %0 = vector.load %arg1[%c0, %c0_0] : memref<32x128xbf16, #tpu.memory_space<vmem>>, vector<32x128xbf16>
    %c0_1 = arith.constant 0 : index
    %c0_2 = arith.constant 0 : index
    %1 = vector.load %arg2[%c0_1, %c0_2] : memref<128x64xbf16, #tpu.memory_space<vmem>>, vector<128x64xbf16>
    %cst = arith.constant dense<0.000000e+00> : vector<32x64xf32>
    %2 = tpu.matmul %0, %1, %cst {dimension_numbers = #tpu.dot_dimension_numbers<[1], [0], [0], [1], [0, 0, 1, 1], [], []>} : vector<32x128xbf16>, vector<128x64xbf16>, vector<32x64xf32> -> vector<32x64xf32>
    %c0_3 = arith.constant 0 : index
    %c0_4 = arith.constant 0 : index
    %3 = vector.load %arg3[%c0_3, %c0_4] : memref<1x64xf32, #tpu.memory_space<vmem>>, vector<1x64xf32>
    %4 = vector.broadcast %3 : vector<1x64xf32> to vector<32x64xf32>
    %5 = arith.addf %2, %4 : vector<32x64xf32>
    %6 = arith.mulf %5, %5 : vector<32x64xf32>
    %7 = arith.mulf %5, %6 : vector<32x64xf32>
    %cst_5 = arith.constant 4.471500e-02 : f32
    %8 = vector.broadcast %cst_5 : f32 to vector<32x64xf32>
    %9 = arith.mulf %8, %7 : vector<32x64xf32>
    %10 = arith.addf %5, %9 : vector<32x64xf32>
    %cst_6 = arith.constant 0.797884583 : f32
    %11 = vector.broadcast %cst_6 : f32 to vector<32x64xf32>
    %12 = arith.mulf %11, %10 : vector<32x64xf32>
    %13 = math.tanh %12 : vector<32x64xf32>
    %cst_7 = arith.constant 1.000000e+00 : f32
    %14 = vector.broadcast %cst_7 : f32 to vector<32x64xf32>
    %15 = arith.addf %14, %13 : vector<32x64xf32>
    %cst_8 = arith.constant 5.000000e-01 : f32
    %16 = vector.broadcast %cst_8 : f32 to vector<32x64xf32>
    %17 = arith.mulf %16, %15 : vector<32x64xf32>
    %18 = arith.mulf %5, %17 : vector<32x64xf32>
    %19 = arith.truncf %18 : vector<32x64xf32> to vector<32x64xbf16>
    %c0_9 = arith.constant 0 : index
    %c0_10 = arith.constant 0 : index
    %20 = vector.load %arg4[%c0_9, %c0_10] : memref<64x12xbf16, #tpu.memory_space<vmem>>, vector<64x12xbf16>
    %cst_11 = arith.constant dense<0.000000e+00> : vector<32x12xf32>
    %21 = tpu.matmul %19, %20, %cst_11 {dimension_numbers = #tpu.dot_dimension_numbers<[1], [0], [0], [1], [0, 0, 1, 1], [], []>} : vector<32x64xbf16>, vector<64x12xbf16>, vector<32x12xf32> -> vector<32x12xf32>
    %c0_12 = arith.constant 0 : index
    %c0_13 = arith.constant 0 : index
    %22 = vector.load %arg5[%c0_12, %c0_13] : memref<1x12xf32, #tpu.memory_space<vmem>>, vector<1x12xf32>
    %23 = vector.broadcast %22 : vector<1x12xf32> to vector<32x12xf32>
    %24 = arith.addf %21, %23 : vector<32x12xf32>
    %25 = arith.negf %24 : vector<32x12xf32>
    %26 = math.exp %25 : vector<32x12xf32>
    %cst_14 = arith.constant 1.000000e+00 : f32
    %27 = vector.broadcast %cst_14 : f32 to vector<32x12xf32>
    %28 = arith.addf %27, %26 : vector<32x12xf32>
    %29 = arith.divf %27, %28 : vector<32x12xf32>
    %30 = arith.truncf %29 : vector<32x12xf32> to vector<32x12xbf16>
    %c0_15 = arith.constant 0 : index
    %c0_16 = arith.constant 0 : index
    %31 = vector.load %arg6[%c0_15, %c0_16] : memref<12x12xbf16, #tpu.memory_space<vmem>>, vector<12x12xbf16>
    %cst_17 = arith.constant dense<0.000000e+00> : vector<32x12xf32>
    %32 = tpu.matmul %30, %31, %cst_17 {dimension_numbers = #tpu.dot_dimension_numbers<[1], [0], [0], [1], [0, 0, 1, 1], [], []>} : vector<32x12xbf16>, vector<12x12xbf16>, vector<32x12xf32> -> vector<32x12xf32>
    %cst_18 = arith.constant 9.99999997E-7 : f32
    %33 = vector.broadcast %cst_18 : f32 to vector<32x12xf32>
    %34 = arith.addf %32, %33 : vector<32x12xf32>
    %35 = tpu.reciprocal %34 {approx = true} : vector<32x12xf32> -> vector<32x12xf32>
    %36 = arith.mulf %29, %35 : vector<32x12xf32>
    %c0_19 = arith.constant 0 : index
    %c0_20 = arith.constant 0 : index
    %37 = vector.load %arg7[%c0_19, %c0_20] : memref<32x12xf32, #tpu.memory_space<vmem>>, vector<32x12xf32>
    tpu.vector_store %arg7[%c0_19, %c0_20], %36 {strides = array<i32>} : memref<32x12xf32, #tpu.memory_space<vmem>>, vector<32x12xf32>,
    return
  }
  func.func @transform_0(%arg0: i32) -> (i32, i32) {
    %c0_i32 = arith.constant 0 : i32
    %c0_i32_0 = arith.constant 0 : i32
    return %arg0, %c0_i32 : i32, i32
  }
  func.func @transform_1(%arg0: i32) -> (i32, i32) {
    %c0_i32 = arith.constant 0 : i32
    %c0_i32_0 = arith.constant 0 : i32
    %c0_i32_1 = arith.constant 0 : i32
    return %c0_i32, %c0_i32_0 : i32, i32
  }
  func.func @transform_2(%arg0: i32) -> (i32, i32) {
    %c0_i32 = arith.constant 0 : i32
    %c0_i32_0 = arith.constant 0 : i32
    %c0_i32_1 = arith.constant 0 : i32
    return %c0_i32, %c0_i32_0 : i32, i32
  }
  func.func @transform_3(%arg0: i32) -> (i32, i32) {
    %c0_i32 = arith.constant 0 : i32
    %c0_i32_0 = arith.constant 0 : i32
    %c0_i32_1 = arith.constant 0 : i32
    return %c0_i32, %c0_i32_0 : i32, i32
  }
  func.func @transform_4(%arg0: i32) -> (i32, i32) {
    %c0_i32 = arith.constant 0 : i32
    %c0_i32_0 = arith.constant 0 : i32
    %c0_i32_1 = arith.constant 0 : i32
    return %c0_i32, %c0_i32_0 : i32, i32
  }
  func.func @transform_5(%arg0: i32) -> (i32, i32) {
    %c0_i32 = arith.constant 0 : i32
    %c0_i32_0 = arith.constant 0 : i32
    %c0_i32_1 = arith.constant 0 : i32
    return %c0_i32, %c0_i32_0 : i32, i32
  }
  func.func @transform_6(%arg0: i32) -> (i32, i32) {
    %c0_i32 = arith.constant 0 : i32
    %c0_i32_0 = arith.constant 0 : i32
    return %arg0, %c0_i32 : i32, i32
  }
}

</mosaic_0001>

<llo_original>
// kernel: gating_network_packed.1
$region0: #{gating_network_packed.1}
  #allocation0 [shape = 'u32[]', space=smem, size = 0x4, offset = 0x4, fixed_abs, tag = 'smem constant byte address 0x4 - core index']
  #allocation1 [shape = 'u32[144,128]{1,0:T(1,128)}', space=vmem, size = 0x12000, scoped, tag = 'internal scratch']
  %s0 = inlined_call_operand.vmem [shape: bf16[128,128], index: 0, kind: input, shape index: {}]
  %s1 = inlined_call_operand.vmem [shape: bf16[128,64], index: 1, kind: input, shape index: {}]
  %s2 = inlined_call_operand.vmem [shape: f32[1,64], index: 2, kind: input, shape index: {}]
  %s3 = inlined_call_operand.vmem [shape: bf16[64,12], index: 3, kind: input, shape index: {}]
  %s4 = inlined_call_operand.vmem [shape: f32[1,12], index: 4, kind: input, shape index: {}]
  %s5 = inlined_call_operand.vmem [shape: bf16[12,12], index: 5, kind: input, shape index: {}]
  %s6 = inlined_call_operand.vmem [shape: f32[128,12], index: 6, kind: output, shape index: {}]
  %s7 = sld [smem:[#allocation0]]
  $region57: #{gating_network_packed.1} parent=0
    _
  %s9 = ssub.s32 1, %s7
  %s10 = scalar_select 0, %s9, %s7
  loop: start=0, step=1, limit=6
  $region2: #{gating_network_packed.1} parent=0 // loop_pre_header
    _
  $region3: #{gating_network_packed.1} parent=0 // loop_header
    %s12 = sphi 0, %s16
    %p13 = scmp.ge.s32.totalorder %s12, 6
    %s22 = sphi 0, %s24
    %s25 = sphi 0, %s22
    %s26 = sphi 0, %s25
    %s42 = sphi 0, %s26
    %s46 = sphi 0, %s46
    %s48 = sphi 0, %s46
    %s49 = sphi 0, %s48
    %s63 = sphi 0, %s49
    %s67 = sphi 0, %s67
    %s69 = sphi 0, %s67
    %s70 = sphi 0, %s69
    %s84 = sphi 0, %s70
    %s88 = sphi 0, %s88
    %s90 = sphi 0, %s88
    %s91 = sphi 0, %s90
    %s105 = sphi 0, %s91
    %s109 = sphi 0, %s109
    %s111 = sphi 0, %s109
    %s112 = sphi 0, %s111
    %s126 = sphi 0, %s112
    %s130 = sphi 0, %s130
    %s132 = sphi 0, %s130
    %s133 = sphi 0, %s132
    %s147 = sphi 0, %s133
    %s153 = sphi 0, %s155
    %s156 = sphi 0, %s153
    %s157 = sphi 0, %s156
    %s173 = sphi 0, %s157
  $region4: #{gating_network_packed.1} parent=0 // loop_header_branch
    %15 = sbr.rel (%p13) target = $region8
  $region5: #{gating_network_packed.1} parent=0 // loop_body
    %s17 = ssub.s32 %s12, 1
    %s18 = ssub.s32 %s12, 2
    %s19 = sadd.s32 %s12, 1
    %s20 = ssub.s32 %s12, %s19
    %p21 = scmp.eq.s32.totalorder %s20, 0
    %s23 = sadd.s32 %s22, 1
    %s24 = scalar_select %p21, %s22, %s23
    %p27 = pneg %p21
    %p28 = scmp.eq.s32.totalorder %s12, 3
    %p29 = por %p27, %p28
    %p30 = scmp.ne.s32.totalorder %s22, %s25
    %p31 = scmp.eq.s32.totalorder %s12, 0
    %p32 = por %p30, %p31
    %p33 = scmp.ne.s32.totalorder %s22, %s25
    %p34 = scmp.eq.s32.totalorder %s17, 3
    %p35 = por %p33, %p34
    %p36 = scmp.ne.s32.totalorder %s25, %s26
    %p37 = scmp.eq.s32.totalorder %s17, 0
    %p38 = por %p36, %p37
    %p39 = scmp.ne.s32.totalorder %s25, %s26
    %p40 = scmp.eq.s32.totalorder %s18, 3
    %p41 = por %p39, %p40
    %p43 = scmp.ne.s32.totalorder %s26, %s42
    %p44 = scmp.eq.s32.totalorder %s18, 0
    %p45 = por %p43, %p44
    %s47 = sadd.s32 %s46, 1
    %p50 = scmp.eq.s32.totalorder %s12, 3
    %p51 = scmp.ne.s32.totalorder %s46, %s48
    %p52 = scmp.eq.s32.totalorder %s12, 0
    %p53 = por %p51, %p52
    %p54 = scmp.ne.s32.totalorder %s46, %s48
    %p55 = scmp.eq.s32.totalorder %s17, 3
    %p56 = por %p54, %p55
    %p57 = scmp.ne.s32.totalorder %s48, %s49
    %p58 = scmp.eq.s32.totalorder %s17, 0
    %p59 = por %p57, %p58
    %p60 = scmp.ne.s32.totalorder %s48, %s49
    %p61 = scmp.eq.s32.totalorder %s18, 3
    %p62 = por %p60, %p61
    %p64 = scmp.ne.s32.totalorder %s49, %s63
    %p65 = scmp.eq.s32.totalorder %s18, 0
    %p66 = por %p64, %p65
    %s68 = sadd.s32 %s67, 1
    %p71 = scmp.eq.s32.totalorder %s12, 3
    %p72 = scmp.ne.s32.totalorder %s67, %s69
    %p73 = scmp.eq.s32.totalorder %s12, 0
    %p74 = por %p72, %p73
    %p75 = scmp.ne.s32.totalorder %s67, %s69
    %p76 = scmp.eq.s32.totalorder %s17, 3
    %p77 = por %p75, %p76
    %p78 = scmp.ne.s32.totalorder %s69, %s70
    %p79 = scmp.eq.s32.totalorder %s17, 0
    %p80 = por %p78, %p79
    %p81 = scmp.ne.s32.totalorder %s69, %s70
    %p82 = scmp.eq.s32.totalorder %s18, 3
    %p83 = por %p81, %p82
    %p85 = scmp.ne.s32.totalorder %s70, %s84
    %p86 = scmp.eq.s32.totalorder %s18, 0
    %p87 = por %p85, %p86
    %s89 = sadd.s32 %s88, 1
    %p92 = scmp.eq.s32.totalorder %s12, 3
    %p93 = scmp.ne.s32.totalorder %s88, %s90
    %p94 = scmp.eq.s32.totalorder %s12, 0
    %p95 = por %p93, %p94
    %p96 = scmp.ne.s32.totalorder %s88, %s90
    %p97 = scmp.eq.s32.totalorder %s17, 3
    %p98 = por %p96, %p97
    %p99 = scmp.ne.s32.totalorder %s90, %s91
    %p100 = scmp.eq.s32.totalorder %s17, 0
    %p101 = por %p99, %p100
    %p102 = scmp.ne.s32.totalorder %s90, %s91
    %p103 = scmp.eq.s32.totalorder %s18, 3
    %p104 = por %p102, %p103
    %p106 = scmp.ne.s32.totalorder %s91, %s105
    %p107 = scmp.eq.s32.totalorder %s18, 0
    %p108 = por %p106, %p107
    %s110 = sadd.s32 %s109, 1
    %p113 = scmp.eq.s32.totalorder %s12, 3
    %p114 = scmp.ne.s32.totalorder %s109, %s111
    %p115 = scmp.eq.s32.totalorder %s12, 0
    %p116 = por %p114, %p115
    %p117 = scmp.ne.s32.totalorder %s109, %s111
    %p118 = scmp.eq.s32.totalorder %s17, 3
    %p119 = por %p117, %p118
    %p120 = scmp.ne.s32.totalorder %s111, %s112
    %p121 = scmp.eq.s32.totalorder %s17, 0
    %p122 = por %p120, %p121
    %p123 = scmp.ne.s32.totalorder %s111, %s112
    %p124 = scmp.eq.s32.totalorder %s18, 3
    %p125 = por %p123, %p124
    %p127 = scmp.ne.s32.totalorder %s112, %s126
    %p128 = scmp.eq.s32.totalorder %s18, 0
    %p129 = por %p127, %p128
    %s131 = sadd.s32 %s130, 1
    %p134 = scmp.eq.s32.totalorder %s12, 3
    %p135 = scmp.ne.s32.totalorder %s130, %s132
    %p136 = scmp.eq.s32.totalorder %s12, 0
    %p137 = por %p135, %p136
    %p138 = scmp.ne.s32.totalorder %s130, %s132
    %p139 = scmp.eq.s32.totalorder %s17, 3
    %p140 = por %p138, %p139
    %p141 = scmp.ne.s32.totalorder %s132, %s133
    %p142 = scmp.eq.s32.totalorder %s17, 0
    %p143 = por %p141, %p142
    %p144 = scmp.ne.s32.totalorder %s132, %s133
    %p145 = scmp.eq.s32.totalorder %s18, 3
    %p146 = por %p144, %p145
    %p148 = scmp.ne.s32.totalorder %s133, %s147
    %p149 = scmp.eq.s32.totalorder %s18, 0
    %p150 = por %p148, %p149
    %s151 = ssub.s32 %s12, %s19
    %p152 = scmp.eq.s32.totalorder %s151, 0
    %s154 = sadd.s32 %s153, 1
    %s155 = scalar_select %p152, %s153, %s154
    %p158 = pneg %p152
    %p159 = scmp.eq.s32.totalorder %s12, 3
    %p160 = por %p158, %p159
    %p161 = scmp.ne.s32.totalorder %s153, %s156
    %p162 = scmp.eq.s32.totalorder %s12, 0
    %p163 = por %p161, %p162
    %p164 = scmp.ne.s32.totalorder %s153, %s156
    %p165 = scmp.eq.s32.totalorder %s17, 3
    %p166 = por %p164, %p165
    %p167 = scmp.ne.s32.totalorder %s156, %s157
    %p168 = scmp.eq.s32.totalorder %s17, 0
    %p169 = por %p167, %p168
    %p170 = scmp.ne.s32.totalorder %s156, %s157
    %p171 = scmp.eq.s32.totalorder %s18, 3
    %p172 = por %p170, %p171
    %p174 = scmp.ne.s32.totalorder %s157, %s173
    %p175 = scmp.eq.s32.totalorder %s18, 0
    %p176 = por %p174, %p175
    %p177 = scmp.le.s32.totalorder 1, %s12
    %p178 = scmp.lt.s32.totalorder %s12, 5
    %p179 = pnand %p177, %p178
    %p180 = pneg %p179
    // Predicated region
    $region9: #{gating_network_packed.1} parent=5 // pred_check
      _
    $region10: #{gating_network_packed.1} parent=5 // pred_check_branch
      %182 = sbr.rel (%p179) target = $region12
    $region11: #{gating_network_packed.1} parent=5 // pred_region
      %s183 = ssub.s32 %s12, 1
      // Predicated region
      $region13: #{gating_network_packed.1} parent=11 // pred_check
        %p184 = pneg %p59
      $region14: #{gating_network_packed.1} parent=11 // pred_check_branch
        %186 = sbr.rel (%p184) target = $region16
      $region15: #{gating_network_packed.1} parent=11 // pred_region
        _
      $region16: #{gating_network_packed.1} parent=11 // pred_fallthru
        _
      // Predicated region
      $region17: #{gating_network_packed.1} parent=11 // pred_check
        %p187 = pneg %p80
      $region18: #{gating_network_packed.1} parent=11 // pred_check_branch
        %189 = sbr.rel (%p187) target = $region20
      $region19: #{gating_network_packed.1} parent=11 // pred_region
        _
      $region20: #{gating_network_packed.1} parent=11 // pred_fallthru
        _
      // Predicated region
      $region21: #{gating_network_packed.1} parent=11 // pred_check
        %p190 = pneg %p101
      $region22: #{gating_network_packed.1} parent=11 // pred_check_branch
        %192 = sbr.rel (%p190) target = $region24
      $region23: #{gating_network_packed.1} parent=11 // pred_region
        _
      $region24: #{gating_network_packed.1} parent=11 // pred_fallthru
        _
      // Predicated region
      $region25: #{gating_network_packed.1} parent=11 // pred_check
        %p193 = pneg %p122
      $region26: #{gating_network_packed.1} parent=11 // pred_check_branch
        %195 = sbr.rel (%p193) target = $region28
      $region27: #{gating_network_packed.1} parent=11 // pred_region
        _
      $region28: #{gating_network_packed.1} parent=11 // pred_fallthru
        _
      // Predicated region
      $region29: #{gating_network_packed.1} parent=11 // pred_check
        %p196 = pneg %p143
      $region30: #{gating_network_packed.1} parent=11 // pred_check_branch
        %198 = sbr.rel (%p196) target = $region32
      $region31: #{gating_network_packed.1} parent=11 // pred_region
        _
      $region32: #{gating_network_packed.1} parent=11 // pred_fallthru
        _
    $region12: #{gating_network_packed.1} parent=5 // pred_fallthru
      _
    %p199 = scmp.lt.s32.totalorder %s12, 4
    // Predicated region
    $region33: #{gating_network_packed.1} parent=5 // pred_check
      %p200 = pneg %p199
    $region34: #{gating_network_packed.1} parent=5 // pred_check_branch
      %202 = sbr.rel (%p200) target = $region36
    $region35: #{gating_network_packed.1} parent=5 // pred_region
      // Predicated region
      $region37: #{gating_network_packed.1} parent=35 // pred_check
        %p203 = pneg %p32
      $region38: #{gating_network_packed.1} parent=35 // pred_check_branch
        %205 = sbr.rel (%p203) target = $region40
      $region39: #{gating_network_packed.1} parent=35 // pred_region
        %s206 = smul.u32 4, %s12
        %p207 = scmp.lt.s32.totalorder %s206, 15
        %s208 = scalar_select %p207, %s206, 15
        %s209 = smul.addr %s208, 4
        %s210 = scalar_lea.vmem %s0, %s209
        %s211 = smul.u32 4, %s12
      $region40: #{gating_network_packed.1} parent=35 // pred_fallthru
        _
    $region36: #{gating_network_packed.1} parent=5 // pred_fallthru
      _
    %p212 = scmp.le.s32.totalorder 1, %s12
    %p213 = scmp.lt.s32.totalorder %s12, 5
    %p214 = pnand %p212, %p213
    %p215 = pneg %p214
    // Predicated region
    $region41: #{gating_network_packed.1} parent=5 // pred_check
      _
    $region42: #{gating_network_packed.1} parent=5 // pred_check_branch
      %217 = sbr.rel (%p214) target = $region44
    $region43: #{gating_network_packed.1} parent=5 // pred_region
      %s218 = ssub.s32 %s12, 1
      %s219 = smul.u32 4, %s17
      %p220 = scmp.lt.s32.totalorder %s219, 15
      %s221 = scalar_select %p220, %s219, 15
      %s222 = smul.addr %s221, 4
      %s223 = scalar_lea.vmem %s0, %s222
      %p224 = pneg %p38
      %p225 = pneg %p35
      %p226 = pneg %p59
      %p227 = pneg %p56
      %p228 = pneg %p80
      %p229 = pneg %p77
      %p230 = pneg %p101
      %p231 = pneg %p98
      %p232 = pneg %p122
      %p233 = pneg %p119
      %p234 = pneg %p143
      %p235 = pneg %p140
      %p236 = pneg %p169
      %p237 = pneg %p166
      %s238 = smul.u32 4, %s17
      %p239 = scmp.lt.s32.totalorder %s238, 15
      %s240 = scalar_select %p239, %s238, 15
      %s241 = smul.addr %s240, 8
      %s242 = scalar_lea.vmem %s6, %s241
      %s243 = smul.u32 4, %s17
      %p244 = scmp.lt.s32.totalorder %s243, 15
      %s245 = scalar_select %p244, %s243, 15
      %s246 = smul.addr %s245, 4
      %s247 = scalar_lea.vmem %s0, %s246
      %s248 = smul.u32 4, %s17
      %s249 = smul.u32 4, %s17
      %p250 = scmp.lt.s32.totalorder %s249, 15
      %s251 = scalar_select %p250, %s249, 15
      %s252 = smul.addr %s251, 8
      %s253 = scalar_lea.vmem %s6, %s252
      %s254 = smul.u32 4, %s17
      %v256 = vld [vmem:[%s247] sm:$0xf]
      %v257 = vld [vmem:[%s247 + $0x4] sm:$0xf]
      %v258 = vld [vmem:[%s247 + $0x8] sm:$0xf]
      %v259 = vld [vmem:[%s247 + $0xc] sm:$0xf]
      %v260 = vld [vmem:[%s1] sm:$0xf]
      %v261 = vld [vmem:[%s1 + $0x4] sm:$0xf]
      %v262 = vld [vmem:[%s1 + $0x8] sm:$0xf]
      %v263 = vld [vmem:[%s1 + $0xc] sm:$0xf]
      %v264 = vld [vmem:[%s1 + $0x10] sm:$0xf]
      %v265 = vld [vmem:[%s1 + $0x14] sm:$0xf]
      %v266 = vld [vmem:[%s1 + $0x18] sm:$0xf]
      %v267 = vld [vmem:[%s1 + $0x1c] sm:$0xf]
      %v268 = vld [vmem:[%s1 + $0x20] sm:$0xf]
      %v269 = vld [vmem:[%s1 + $0x24] sm:$0xf]
      %v270 = vld [vmem:[%s1 + $0x28] sm:$0xf]
      %v271 = vld [vmem:[%s1 + $0x2c] sm:$0xf]
      %v272 = vld [vmem:[%s1 + $0x30] sm:$0xf]
      %v273 = vld [vmem:[%s1 + $0x34] sm:$0xf]
      %v274 = vld [vmem:[%s1 + $0x38] sm:$0xf]
      %v275 = vld [vmem:[%s1 + $0x3c] sm:$0xf]
      %v276 = vld [vmem:[%s2] sm:$0x1]
      %v278 = vlaneseq
      %v279 = vshrl.u32 %v278, 7
      %v280 = vsub.s32 0, %v279
      %v281 = vrot.slane %v276, %v280
      %v287 = vunpack.c.l.b16 %v256
      %v288 = vunpack.c.l.b16 %v257
      %v289 = vunpack.c.l.b16 %v258
      %v290 = vunpack.c.l.b16 %v259
      %v291 = vpack.c.b16 %v288, %v287
      %v292 = vpack.c.b16 %v290, %v289
      %v311 = vunpack.c.l.b16 %v260
      %v312 = vunpack.c.l.b16 %v261
      %v313 = vunpack.c.l.b16 %v262
      %v314 = vunpack.c.l.b16 %v263
      %v315 = vunpack.c.l.b16 %v264
      %v316 = vunpack.c.l.b16 %v265
      %v317 = vunpack.c.l.b16 %v266
      %v318 = vunpack.c.l.b16 %v267
      %v319 = vunpack.c.l.b16 %v268
      %v320 = vunpack.c.l.b16 %v269
      %v321 = vunpack.c.l.b16 %v270
      %v322 = vunpack.c.l.b16 %v271
      %v323 = vunpack.c.l.b16 %v272
      %v324 = vunpack.c.l.b16 %v273
      %v325 = vunpack.c.l.b16 %v274
      %v326 = vunpack.c.l.b16 %v275
      %v327 = vpack.c.b16 %v312, %v311
      %v328 = vpack.c.b16 %v314, %v313
      %v329 = vpack.c.b16 %v316, %v315
      %v330 = vpack.c.b16 %v318, %v317
      %v331 = vpack.c.b16 %v320, %v319
      %v332 = vpack.c.b16 %v322, %v321
      %v333 = vpack.c.b16 %v324, %v323
      %v334 = vpack.c.b16 %v326, %v325
      %343 = vmatprep.subr.bf16.mxu0 0
      %344 = vmatpush1.bf16.msra.mxu0 %v334
      %345 = vmatprep.subr.bf16.mxu0 0
      %346 = vmatpush1.bf16.msra.mxu0 %v333
      %347 = vmatprep.subr.bf16.mxu0 0
      %348 = vmatpush1.bf16.msra.mxu0 %v332
      %349 = vmatprep.subr.bf16.mxu0 0
      %350 = vmatpush1.bf16.msra.mxu0 %v331
      %351 = vmatprep.subr.bf16.mxu0 0
      %352 = vmatpush1.bf16.msra.mxu0 %v330
      %353 = vmatprep.subr.bf16.mxu0 0
      %354 = vmatpush1.bf16.msra.mxu0 %v329
      %355 = vmatprep.subr.bf16.mxu0 0
      %356 = vmatpush1.bf16.msra.mxu0 %v328
      %357 = vmatprep.subr.bf16.mxu0 0
      %358 = vmatpush1.bf16.msra.mxu0 %v327
      %359 = vmatprep.subr.bf16.mxu0 0
      %360 = vmatpush2.bf16.msra.mxu0 0
      %361 = vmatprep.subr.bf16.mxu0 0
      %362 = vmatpush2.bf16.msra.mxu0 0
      %363 = vmatprep.subr.bf16.mxu0 0
      %364 = vmatpush2.bf16.msra.mxu0 0
      %365 = vmatprep.subr.bf16.mxu0 0
      %366 = vmatpush2.bf16.msra.mxu0 0
      %367 = vmatprep.subr.bf16.mxu0 0
      %368 = vmatpush2.bf16.msra.mxu0 0
      %369 = vmatprep.subr.bf16.mxu0 0
      %370 = vmatpush2.bf16.msra.mxu0 0
      %371 = vmatprep.subr.bf16.mxu0 0
      %372 = vmatpush2.bf16.msra.mxu0 0
      %373 = vmatprep.subr.bf16.mxu0 0
      %374 = vmatpush2.bf16.msra.mxu0 0
      %375 = vmatprep.mubr.bf16.mxu0 0
      %376 = vmatmul.mubr.bf16.gmra.mxu0 %v291
      %v377 = vpop.f32.mrf.mxu0
      %v378 = vadd.f32 %v281, %v377
      %v379 = vpop.f32.mrf.mxu0
      %v380 = vpop.f32.mrf.mxu0
      %v381 = vadd.f32 %v281, %v380
      %v382 = vpop.f32.mrf.mxu0
      %383 = vmatprep.mubr.bf16.mxu0 0
      %384 = vmatmul.mubr.bf16.gmra.mxu0 %v292
      %v385 = vpop.f32.mrf.mxu0
      %v386 = vadd.f32 %v281, %v385
      %v387 = vpop.f32.mrf.mxu0
      %v388 = vpop.f32.mrf.mxu0
      %v389 = vadd.f32 %v281, %v388
      %v390 = vpop.f32.mrf.mxu0
      %391 = vdwg.mxu0
      %v392 = vmul.f32 %v378, %v378
      %v393 = vmul.f32 %v381, %v381
      %v394 = vmul.f32 %v386, %v386
      %v395 = vmul.f32 %v389, %v389
      %v396 = vmul.f32 %v378, %v392
      %v397 = vmul.f32 %v381, %v393
      %v398 = vmul.f32 %v386, %v394
      %v399 = vmul.f32 %v389, %v395
      %v400 = vmul.f32 %v396, 0.044715
      %v401 = vmul.f32 %v397, 0.044715
      %v402 = vmul.f32 %v398, 0.044715
      %v403 = vmul.f32 %v399, 0.044715
      %v404 = vadd.f32 %v378, %v400
      %v405 = vadd.f32 %v381, %v401
      %v406 = vadd.f32 %v386, %v402
      %v407 = vadd.f32 %v389, %v403
      %v408 = vmul.f32 %v404, 0.7978846
      %v409 = vmul.f32 %v405, 0.7978846
      %v410 = vmul.f32 %v406, 0.7978846
      %v411 = vmul.f32 %v407, 0.7978846
      %v412 = vtanh.pop %v408
      %v413 = vtanh.pop %v409
      %v414 = vtanh.pop %v410
      %v415 = vtanh.pop %v411
      %v416 = vadd.f32 %v412, 1.0
      %v417 = vadd.f32 %v413, 1.0
      %v418 = vadd.f32 %v414, 1.0
      %v419 = vadd.f32 %v415, 1.0
      %v420 = vmul.f32 %v416, 0.5
      %v421 = vmul.f32 %v417, 0.5
      %v422 = vmul.f32 %v418, 0.5
      %v423 = vmul.f32 %v419, 0.5
      %v424 = vmul.f32 %v378, %v420
      %v425 = vmul.f32 %v381, %v421
      %v426 = vmul.f32 %v386, %v422
      %v427 = vmul.f32 %v389, %v423
      %v428 = vpack.c.bf16 %v425, %v424
      %v429 = vpack.c.bf16 %v427, %v426
      %v430 = vld [vmem:[%s3] sm:$0xf]
      %v431 = vld [vmem:[%s3 + $0x4] sm:$0xf]
      %v432 = vld [vmem:[%s3 + $0x8] sm:$0xf]
      %v433 = vld [vmem:[%s3 + $0xc] sm:$0xf]
      %v434 = vld [vmem:[%s3 + $0x10] sm:$0xf]
      %v435 = vld [vmem:[%s3 + $0x14] sm:$0xf]
      %v436 = vld [vmem:[%s3 + $0x18] sm:$0xf]
      %v437 = vld [vmem:[%s3 + $0x1c] sm:$0xf]
      %v438 = vld [vmem:[%s4] sm:$0x1]
      %v440 = vlaneseq
      %v441 = vshrl.u32 %v440, 7
      %v442 = vsub.s32 0, %v441
      %v443 = vrot.slane %v438, %v442
      %v453 = vunpack.c.l.b16 %v430
      %v454 = vunpack.c.l.b16 %v431
      %v455 = vunpack.c.l.b16 %v432
      %v456 = vunpack.c.l.b16 %v433
      %v457 = vunpack.c.l.b16 %v434
      %v458 = vunpack.c.l.b16 %v435
      %v459 = vunpack.c.l.b16 %v436
      %v460 = vunpack.c.l.b16 %v437
      %v461 = vpack.c.b16 %v454, %v453
      %v462 = vpack.c.b16 %v456, %v455
      %v463 = vpack.c.b16 %v458, %v457
      %v464 = vpack.c.b16 %v460, %v459
      %vm469 = vcmask 523264
      %v471 = vsel %vm469, %v428, 0
      %v474 = vsel %vm469, %v429, 0
      %476 = vmatprep.subr.bf16.mxu0 0
      %477 = vmatpush1.bf16.msra.mxu0 0
      %478 = vmatprep.subr.bf16.mxu0 0
      %479 = vmatpush1.bf16.msra.mxu0 0
      %480 = vmatprep.subr.bf16.mxu0 0
      %481 = vmatpush1.bf16.msra.mxu0 0
      %482 = vmatprep.subr.bf16.mxu0 0
      %483 = vmatpush1.bf16.msra.mxu0 0
      %484 = vmatprep.subr.bf16.mxu0 0
      %485 = vmatpush1.bf16.msra.mxu0 %v464
      %486 = vmatprep.subr.bf16.mxu0 0
      %487 = vmatpush1.bf16.msra.mxu0 %v463
      %488 = vmatprep.subr.bf16.mxu0 0
      %489 = vmatpush1.bf16.msra.mxu0 %v462
      %490 = vmatprep.subr.bf16.mxu0 0
      %491 = vmatpush1.bf16.msra.mxu0 %v461
      %492 = vmatprep.subr.bf16.mxu0 0
      %493 = vmatpush2.bf16.msra.mxu0 0
      %494 = vmatprep.subr.bf16.mxu0 0
      %495 = vmatpush2.bf16.msra.mxu0 0
      %496 = vmatprep.subr.bf16.mxu0 0
      %497 = vmatpush2.bf16.msra.mxu0 0
      %498 = vmatprep.subr.bf16.mxu0 0
      %499 = vmatpush2.bf16.msra.mxu0 0
      %500 = vmatprep.subr.bf16.mxu0 0
      %501 = vmatpush2.bf16.msra.mxu0 0
      %502 = vmatprep.subr.bf16.mxu0 0
      %503 = vmatpush2.bf16.msra.mxu0 0
      %504 = vmatprep.subr.bf16.mxu0 0
      %505 = vmatpush2.bf16.msra.mxu0 0
      %506 = vmatprep.subr.bf16.mxu0 0
      %507 = vmatpush2.bf16.msra.mxu0 0
      %508 = vmatprep.mubr.bf16.mxu0 0
      %509 = vmatmul.mubr.bf16.gmra.mxu0 %v471
      %v510 = vpop.f32.mrf.mxu0
      %v511 = vadd.f32 %v443, %v510
      %v512 = vpop.f32.mrf.mxu0
      %v513 = vpop.f32.mrf.mxu0
      %v514 = vadd.f32 %v443, %v513
      %v515 = vpop.f32.mrf.mxu0
      %516 = vmatprep.mubr.bf16.mxu0 0
      %517 = vmatmul.mubr.bf16.gmra.mxu0 %v474
      %v518 = vpop.f32.mrf.mxu0
      %v519 = vadd.f32 %v443, %v518
      %v520 = vpop.f32.mrf.mxu0
      %v521 = vpop.f32.mrf.mxu0
      %v522 = vadd.f32 %v443, %v521
      %v523 = vpop.f32.mrf.mxu0
      %524 = vdwg.mxu0
      %v525 = vxor.u32 %v511, 2147483648
      %v526 = vxor.u32 %v514, 2147483648
      %v527 = vxor.u32 %v519, 2147483648
      %v528 = vxor.u32 %v522, 2147483648
      %v529 = vmul.f32 %v525, 1.442695
      %v530 = vpow.pop %v529
      %v531 = vmul.f32 %v526, 1.442695
      %v532 = vpow.pop %v531
      %v533 = vmul.f32 %v527, 1.442695
      %v534 = vpow.pop %v533
      %v535 = vmul.f32 %v528, 1.442695
      %v536 = vpow.pop %v535
      %v537 = vadd.f32 %v530, 1.0
      %v538 = vadd.f32 %v532, 1.0
      %v539 = vadd.f32 %v534, 1.0
      %v540 = vadd.f32 %v536, 1.0
      %v541 = vrcp.pop %v537
      %v542 = vmul.f32 1.0, %v541
      %v543 = vrcp.pop %v538
      %v544 = vmul.f32 1.0, %v543
      %v545 = vrcp.pop %v539
      %v546 = vmul.f32 1.0, %v545
      %v547 = vrcp.pop %v540
      %v548 = vmul.f32 1.0, %v547
      %v549 = vpack.c.bf16 %v544, %v542
      %v550 = vpack.c.bf16 %v548, %v546
      %v551 = vld [vmem:[%s5] sm:$0xf]
      %v552 = vld [vmem:[%s5 + $0x4] sm:$0x3]
      %v555 = vunpack.c.l.b16 %v551
      %v556 = vunpack.c.l.b16 %v552
      %v557 = vpack.c.b16 %v556, %v555
      %vm558 = vcmask 97280
      %v560 = vsel %vm558, %v549, 0
      %v563 = vsel %vm558, %v550, 0
      %vm565 = vcmask 1045504
      %v567 = vsel %vm565, %v557, 0
      %569 = vmatprep.subr.bf16.mxu0 0
      %570 = vmatpush1.bf16.msra.mxu0 0
      %571 = vmatprep.subr.bf16.mxu0 0
      %572 = vmatpush1.bf16.msra.mxu0 0
      %573 = vmatprep.subr.bf16.mxu0 0
      %574 = vmatpush1.bf16.msra.mxu0 0
      %575 = vmatprep.subr.bf16.mxu0 0
      %576 = vmatpush1.bf16.msra.mxu0 0
      %577 = vmatprep.subr.bf16.mxu0 0
      %578 = vmatpush1.bf16.msra.mxu0 0
      %579 = vmatprep.subr.bf16.mxu0 0
      %580 = vmatpush1.bf16.msra.mxu0 0
      %581 = vmatprep.subr.bf16.mxu0 0
      %582 = vmatpush1.bf16.msra.mxu0 0
      %583 = vmatprep.subr.bf16.mxu0 0
      %584 = vmatpush1.bf16.msra.mxu0 %v567
      %585 = vmatprep.subr.bf16.mxu0 0
      %586 = vmatpush2.bf16.msra.mxu0 0
      %587 = vmatprep.subr.bf16.mxu0 0
      %588 = vmatpush2.bf16.msra.mxu0 0
      %589 = vmatprep.subr.bf16.mxu0 0
      %590 = vmatpush2.bf16.msra.mxu0 0
      %591 = vmatprep.subr.bf16.mxu0 0
      %592 = vmatpush2.bf16.msra.mxu0 0
      %593 = vmatprep.subr.bf16.mxu0 0
      %594 = vmatpush2.bf16.msra.mxu0 0
      %595 = vmatprep.subr.bf16.mxu0 0
      %596 = vmatpush2.bf16.msra.mxu0 0
      %597 = vmatprep.subr.bf16.mxu0 0
      %598 = vmatpush2.bf16.msra.mxu0 0
      %599 = vmatprep.subr.bf16.mxu0 0
      %600 = vmatpush2.bf16.msra.mxu0 0
      %601 = vmatprep.mubr.bf16.mxu0 0
      %602 = vmatmul.mubr.bf16.gmra.mxu0 %v560
      %v603 = vpop.f32.mrf.mxu0
      %v604 = vadd.f32 1e-06, %v603
      %v605 = vpop.f32.mrf.mxu0
      %v606 = vpop.f32.mrf.mxu0
      %v607 = vadd.f32 1e-06, %v606
      %v608 = vpop.f32.mrf.mxu0
      %609 = vmatprep.mubr.bf16.mxu0 0
      %610 = vmatmul.mubr.bf16.gmra.mxu0 %v563
      %v611 = vpop.f32.mrf.mxu0
      %v612 = vadd.f32 1e-06, %v611
      %v613 = vpop.f32.mrf.mxu0
      %v614 = vpop.f32.mrf.mxu0
      %v615 = vadd.f32 1e-06, %v614
      %v616 = vpop.f32.mrf.mxu0
      %617 = vdwg.mxu0
      %v618 = vrcp.pop %v604
      %v619 = vrcp.pop %v607
      %v620 = vrcp.pop %v612
      %v621 = vrcp.pop %v615
      %v622 = vmul.f32 %v542, %v618
      %v623 = vmul.f32 %v544, %v619
      %v624 = vmul.f32 %v546, %v620
      %v625 = vmul.f32 %v548, %v621
      %626 = vst.msk [vmem:[%s253] sm:$0xff] %vm558, %v622
      %627 = vst.msk [vmem:[%s253 + $0x8] sm:$0xff] %vm558, %v623
      %628 = vst.msk [vmem:[%s253 + $0x10] sm:$0xff] %vm558, %v624
      %629 = vst.msk [vmem:[%s253 + $0x18] sm:$0xff] %vm558, %v625
      %s630 = smul.u32 4, %s17
      %p631 = scmp.lt.s32.totalorder %s630, 15
      %s632 = scalar_select %p631, %s630, 15
      %s633 = smul.addr %s632, 8
      %s634 = scalar_lea.vmem %s6, %s633
      // Predicated region
      $region45: #{gating_network_packed.1} parent=43 // pred_check
        %p635 = pneg %p166
      $region46: #{gating_network_packed.1} parent=43 // pred_check_branch
        %637 = sbr.rel (%p635) target = $region48
      $region47: #{gating_network_packed.1} parent=43 // pred_region
        %s638 = smul.u32 4, %s17
      $region48: #{gating_network_packed.1} parent=43 // pred_fallthru
        _
    $region44: #{gating_network_packed.1} parent=5 // pred_fallthru
      _
    %p639 = scmp.le.s32.totalorder 2, %s12
    // Predicated region
    $region49: #{gating_network_packed.1} parent=5 // pred_check
      %p640 = pneg %p639
    $region50: #{gating_network_packed.1} parent=5 // pred_check_branch
      %642 = sbr.rel (%p640) target = $region52
    $region51: #{gating_network_packed.1} parent=5 // pred_region
      %s643 = ssub.s32 %s12, 2
      // Predicated region
      $region53: #{gating_network_packed.1} parent=51 // pred_check
        %p644 = pneg %p172
      $region54: #{gating_network_packed.1} parent=51 // pred_check_branch
        %646 = sbr.rel (%p644) target = $region56
      $region55: #{gating_network_packed.1} parent=51 // pred_region
        %s647 = smul.u32 4, %s18
        %p648 = scmp.lt.s32.totalorder %s647, 15
        %s649 = scalar_select %p648, %s647, 15
        %s650 = smul.addr %s649, 8
        %s651 = scalar_lea.vmem %s6, %s650
      $region56: #{gating_network_packed.1} parent=51 // pred_fallthru
        _
    $region52: #{gating_network_packed.1} parent=5 // pred_fallthru
      _
  $region6: #{gating_network_packed.1} parent=0 // loop_footer
    %s16 = sadd.s32 1, %s12
  $region7: #{gating_network_packed.1} parent=0 // loop_footer_branch
    %11 = sbr.rel target = $region3
  $region8: #{gating_network_packed.1} parent=0 // loop_exit
    _

</llo_original>
